<compile_context>
chip_gen: v5e
topology: v5e:2x2
jax: 0.10.0
libtpu: 0.0.40
codegen_flags: <defaults>
</compile_context>

<pallas_src>
from typing import NamedTuple

import jax
import jax.numpy as jnp
from jax.experimental import pallas as pl
from jax.experimental.pallas import tpu as pltpu


# ------------------------------------------------------------------ kernel --
def _velocity_kernel(x_ref, bias1_ref, w1_ref, w2_ref, b2_ref, out_ref):
    # x_ref:     (Cp, Lt)    bf16   -- batch flattened into the lane axis
    # bias1_ref: (hid, Lt)   f32    -- b1 + time-conditioning, pre-broadcast
    # w1_ref:    (hid, Cp)   bf16
    # w2_ref:    (Cp, hid)   bf16
    # b2_ref:    (Cp, 1)     f32
    x_bf = x_ref[...]

    # 1x1 conv C -> hidden (MXU, bf16 x bf16 -> f32 accumulate)
    h1 = jnp.dot(w1_ref[...], x_bf, preferred_element_type=jnp.float32)
    h1 = h1 + bias1_ref[...]
    h1 = h1 * jax.nn.sigmoid(h1)                       # SiLU in f32 (VPU + EUP)

    # 1x1 conv hidden -> C (MXU), bias + residual in f32
    out = jnp.dot(w2_ref[...], h1.astype(jnp.bfloat16),
                  preferred_element_type=jnp.float32)
    out_ref[...] = (out + b2_ref[...] + x_bf.astype(jnp.float32)).astype(out_ref.dtype)


# ----------------------------------------------------------------- wrapper --
def velocity_forward_pallas(x_nchw, temb, params, *, lane_tile=None):
    B, C, H, W = x_nchw.shape
    HW = H * W
    L = B * HW                                # lane axis = batch * spatial
    hidden = params["w1"].shape[0]

    # ---- hoisted time-conditioning MLP (tiny; cheap in XLA) -------------
    th = temb.astype(jnp.float32) @ params["wt1"].T + params["bt1"][:, 0][None]
    th = th * jax.nn.sigmoid(th)
    cond = th @ params["wt2"].T + params["bt2"][:, 0][None]          # (B, hidden)

    # effective first-layer bias, broadcast to the (hidden, B*HW) lane layout
    bias1 = params["b1"][:, 0][None] + cond                          # (B, hidden)
    bias1_full = jnp.broadcast_to(
        bias1.T[:, :, None], (hidden, B, HW)).reshape(hidden, L).astype(jnp.float32)

    # ---- channel padding so the x tile fills all 8 vreg sublanes --------
    Cp = -(-C // 8) * 8
    x_flat = jnp.transpose(x_nchw.reshape(B, C, HW), (1, 0, 2)).reshape(C, L)
    x_pad = jnp.zeros((Cp, L), jnp.bfloat16).at[:C].set(x_flat.astype(jnp.bfloat16))
    w1_pad = jnp.zeros((hidden, Cp), jnp.bfloat16).at[:, :C].set(
        params["w1"].astype(jnp.bfloat16))
    w2_pad = jnp.zeros((Cp, hidden), jnp.bfloat16).at[:C].set(
        params["w2"].astype(jnp.bfloat16))
    b2_pad = jnp.zeros((Cp, 1), jnp.float32).at[:C].set(params["b2"].astype(jnp.float32))

    # ---- lane-axis tiling: default = whole batch in one grid step -------
    # (v7x: pass lane_tile = L // 2 to shard the parallel axis over 2 TCs.)
    Lt = L if lane_tile is None else lane_tile
    assert L % Lt == 0 and (Lt == L or Lt % 128 == 0)
    grid = (L // Lt,)

    out = pl.pallas_call(
        _velocity_kernel,
        out_shape=jax.ShapeDtypeStruct((Cp, L), jnp.float32),
        grid=grid,
        in_specs=[
            pl.BlockSpec((Cp, Lt), lambda i: (0, i)),        # x (lane tile)
            pl.BlockSpec((hidden, Lt), lambda i: (0, i)),    # b1 + cond (lane tile)
            pl.BlockSpec((hidden, Cp), lambda i: (0, 0)),    # w1 (resident)
            pl.BlockSpec((Cp, hidden), lambda i: (0, 0)),    # w2 (resident)
            pl.BlockSpec((Cp, 1), lambda i: (0, 0)),         # b2 (resident)
        ],
        out_specs=pl.BlockSpec((Cp, Lt), lambda i: (0, i)),
        compiler_params=pltpu.CompilerParams(dimension_semantics=("parallel",)),
    )(x_pad, bias1_full, w1_pad, w2_pad, b2_pad)

    out = out[:C].reshape(C, B, HW)
    return jnp.transpose(out, (1, 0, 2)).reshape(B, C, H, W)


# -------------------------------------------------------- pure-JAX reference --
def velocity_forward_ref(x_nchw, temb, p):
    """Mirrors the kernel's bf16-operand / f32-accumulate numerics."""
    B, C, H, W = x_nchw.shape
    x = x_nchw.reshape(B, C, H * W)
    th = temb.astype(jnp.float32) @ p["wt1"].T + p["bt1"][:, 0][None]
    th = th * jax.nn.sigmoid(th)
    cond = th @ p["wt2"].T + p["bt2"][:, 0][None]                    # (B, hidden)

    x_bf = x.astype(jnp.bfloat16)
    w1_bf = p["w1"].astype(jnp.bfloat16)
    w2_bf = p["w2"].astype(jnp.bfloat16)

    h1 = jnp.einsum("hc,bcs->bhs", w1_bf, x_bf,
                    preferred_element_type=jnp.float32)
    h1 = h1 + p["b1"][None] + cond[:, :, None]
    h1 = h1 * jax.nn.sigmoid(h1)
    out = jnp.einsum("ch,bhs->bcs", w2_bf, h1.astype(jnp.bfloat16),
                     preferred_element_type=jnp.float32)
    out = out + p["b2"][None] + x_bf.astype(jnp.float32)
    return out.reshape(B, C, H, W)


# --------------------------------------------------- synthetic velocity model --
class UNetOutput(NamedTuple):
    sample: jnp.ndarray


def sinusoidal_embedding(t, dim):
    half = dim // 2
    freqs = jnp.exp(-jnp.log(10000.0) * jnp.arange(half, dtype=jnp.float32) / half)
    args = t.astype(jnp.float32)[:, None] * freqs[None, :]
    return jnp.concatenate([jnp.sin(args), jnp.cos(args)], axis=-1)   # (B, dim)


class TinyVelocityUNet:
    """Synthetic diffusers-style velocity model; hot path runs in Pallas."""

    def __init__(self, key, channels, hidden, time_emb_dim):
        self.channels = channels
        self.hidden = hidden
        self.time_emb_dim = time_emb_dim
        ks = jax.random.split(key, 4)
        s = 0.1
        self.params = {
            "wt1": s * jax.random.normal(ks[0], (hidden, time_emb_dim), jnp.float32),
            "bt1": jnp.zeros((hidden, 1), jnp.float32),
            "wt2": s * jax.random.normal(ks[1], (hidden, hidden), jnp.float32),
            "bt2": jnp.zeros((hidden, 1), jnp.float32),
            "w1":  s * jax.random.normal(ks[2], (hidden, channels), jnp.float32),
            "b1":  jnp.zeros((hidden, 1), jnp.float32),
            "w2":  s * jax.random.normal(ks[3], (channels, hidden), jnp.float32),
            "b2":  jnp.zeros((channels, 1), jnp.float32),
        }

    def __call__(self, x, timestep):
        temb = sinusoidal_embedding(timestep, self.time_emb_dim)
        sample = velocity_forward_pallas(x, temb, self.params)
        return UNetOutput(sample=sample)

    def reference(self, x, timestep):
        temb = sinusoidal_embedding(timestep, self.time_emb_dim)
        return velocity_forward_ref(x, temb, self.params)


class ConditionedVelocityModel:
    """JAX mirror of the PyTorch wrapper."""

    def __init__(self, velocity_model, h):
        self.velocity_model = velocity_model
        self.h = h  # registered buffer; unused in forward (matches reference)

    def __call__(self, t, x, *args, **kwargs):
        return self.velocity_model(x, timestep=t).sample


# --------------------------------------------------------------------- main --
if __name__ == "__main__":
    B, C, H, W = 2, 4, 16, 16
    hidden, time_emb_dim = 32, 32

    key = jax.random.PRNGKey(0)
    k_model, k_x, k_t = jax.random.split(key, 3)

    velocity_model = TinyVelocityUNet(k_model, C, hidden, time_emb_dim)
    h_buf = jnp.asarray(0.01, jnp.float32)           # registered buffer (unused)
    model = ConditionedVelocityModel(velocity_model, h_buf)

    x = jax.random.normal(k_x, (B, C, H, W), jnp.float32)
    t = jax.random.uniform(k_t, (B,), jnp.float32) * 1000.0

    out = jax.block_until_ready(model(t, x))
    ref = jax.block_until_ready(velocity_model.reference(x, t))

    assert out.shape == (B, C, H, W)
    err = float(jnp.max(jnp.abs(out - ref)))
    assert jnp.allclose(out, ref, atol=2e-2, rtol=2e-2), err

    print("KERNEL_OK")
</pallas_src>

<mosaic_0001>
module attributes {stable_mosaic.version = 11 : i64} {
  func.func @_velocity_kernel(%arg0: i32, %arg1: memref<8x512xbf16, #tpu.memory_space<vmem>>, %arg2: memref<32x512xf32, #tpu.memory_space<vmem>>, %arg3: memref<32x8xbf16, #tpu.memory_space<vmem>>, %arg4: memref<8x32xbf16, #tpu.memory_space<vmem>>, %arg5: memref<8x1xf32, #tpu.memory_space<vmem>>, %arg6: memref<8x512xf32, #tpu.memory_space<vmem>>) attributes {dimension_semantics = [#tpu.dimension_semantics<parallel>], iteration_bounds = array<i64: 1>, scalar_prefetch = 0 : i64, scratch_operands = 0 : i64, tpu.core_type = #tpu.core_type<tc>, window_params = [{transform_indices = @transform_0, window_bounds = array<i64: 8, 512>}, {transform_indices = @transform_1, window_bounds = array<i64: 32, 512>}, {pipeline_mode = #tpu.pipeline_mode<synchronous>, transform_indices = @transform_2, window_bounds = array<i64: 32, 8>}, {pipeline_mode = #tpu.pipeline_mode<synchronous>, transform_indices = @transform_3, window_bounds = array<i64: 8, 32>}, {pipeline_mode = #tpu.pipeline_mode<synchronous>, transform_indices = @transform_4, window_bounds = array<i64: 8, 1>}, {transform_indices = @transform_5, window_bounds = array<i64: 8, 512>}]} {
    %c0 = arith.constant 0 : index
    %c0_0 = arith.constant 0 : index
    %0 = vector.load %arg1[%c0, %c0_0] : memref<8x512xbf16, #tpu.memory_space<vmem>>, vector<8x512xbf16>
    %c0_1 = arith.constant 0 : index
    %c0_2 = arith.constant 0 : index
    %1 = vector.load %arg3[%c0_1, %c0_2] : memref<32x8xbf16, #tpu.memory_space<vmem>>, vector<32x8xbf16>
    %cst = arith.constant dense<0.000000e+00> : vector<32x512xf32>
    %2 = tpu.matmul %1, %0, %cst {dimension_numbers = #tpu.dot_dimension_numbers<[1], [0], [0], [1], [0, 0, 1, 1], [], []>} : vector<32x8xbf16>, vector<8x512xbf16>, vector<32x512xf32> -> vector<32x512xf32>
    %c0_3 = arith.constant 0 : index
    %c0_4 = arith.constant 0 : index
    %3 = vector.load %arg2[%c0_3, %c0_4] : memref<32x512xf32, #tpu.memory_space<vmem>>, vector<32x512xf32>
    %4 = arith.addf %2, %3 : vector<32x512xf32>
    %5 = arith.negf %4 : vector<32x512xf32>
    %6 = math.exp %5 : vector<32x512xf32>
    %cst_5 = arith.constant 1.000000e+00 : f32
    %7 = vector.broadcast %cst_5 : f32 to vector<32x512xf32>
    %8 = arith.addf %7, %6 : vector<32x512xf32>
    %9 = arith.divf %7, %8 : vector<32x512xf32>
    %10 = arith.mulf %4, %9 : vector<32x512xf32>
    %c0_6 = arith.constant 0 : index
    %c0_7 = arith.constant 0 : index
    %11 = vector.load %arg4[%c0_6, %c0_7] : memref<8x32xbf16, #tpu.memory_space<vmem>>, vector<8x32xbf16>
    %12 = arith.truncf %10 : vector<32x512xf32> to vector<32x512xbf16>
    %cst_8 = arith.constant dense<0.000000e+00> : vector<8x512xf32>
    %13 = tpu.matmul %11, %12, %cst_8 {dimension_numbers = #tpu.dot_dimension_numbers<[1], [0], [0], [1], [0, 0, 1, 1], [], []>} : vector<8x32xbf16>, vector<32x512xbf16>, vector<8x512xf32> -> vector<8x512xf32>
    %c0_9 = arith.constant 0 : index
    %c0_10 = arith.constant 0 : index
    %14 = vector.load %arg5[%c0_9, %c0_10] : memref<8x1xf32, #tpu.memory_space<vmem>>, vector<8x1xf32>
    %15 = vector.broadcast %14 : vector<8x1xf32> to vector<8x512xf32>
    %16 = arith.addf %13, %15 : vector<8x512xf32>
    %17 = arith.extf %0 : vector<8x512xbf16> to vector<8x512xf32>
    %18 = arith.addf %16, %17 : vector<8x512xf32>
    %c0_11 = arith.constant 0 : index
    %c0_12 = arith.constant 0 : index
    %19 = vector.load %arg6[%c0_11, %c0_12] : memref<8x512xf32, #tpu.memory_space<vmem>>, vector<8x512xf32>
    tpu.vector_store %arg6[%c0_11, %c0_12], %18 {strides = array<i32>} : memref<8x512xf32, #tpu.memory_space<vmem>>, vector<8x512xf32>,
    return
  }
  func.func @transform_0(%arg0: i32) -> (i32, i32) {
    %c0_i32 = arith.constant 0 : i32
    %c0_i32_0 = arith.constant 0 : i32
    return %c0_i32, %arg0 : i32, i32
  }
  func.func @transform_1(%arg0: i32) -> (i32, i32) {
    %c0_i32 = arith.constant 0 : i32
    %c0_i32_0 = arith.constant 0 : i32
    return %c0_i32, %arg0 : i32, i32
  }
  func.func @transform_2(%arg0: i32) -> (i32, i32) {
    %c0_i32 = arith.constant 0 : i32
    %c0_i32_0 = arith.constant 0 : i32
    %c0_i32_1 = arith.constant 0 : i32
    return %c0_i32, %c0_i32_0 : i32, i32
  }
  func.func @transform_3(%arg0: i32) -> (i32, i32) {
    %c0_i32 = arith.constant 0 : i32
    %c0_i32_0 = arith.constant 0 : i32
    %c0_i32_1 = arith.constant 0 : i32
    return %c0_i32, %c0_i32_0 : i32, i32
  }
  func.func @transform_4(%arg0: i32) -> (i32, i32) {
    %c0_i32 = arith.constant 0 : i32
    %c0_i32_0 = arith.constant 0 : i32
    %c0_i32_1 = arith.constant 0 : i32
    return %c0_i32, %c0_i32_0 : i32, i32
  }
  func.func @transform_5(%arg0: i32) -> (i32, i32) {
    %c0_i32 = arith.constant 0 : i32
    %c0_i32_0 = arith.constant 0 : i32
    return %c0_i32, %arg0 : i32, i32
  }
}

</mosaic_0001>

<llo_original>
// kernel: tpu_custom_call.1
$region0: #{tpu_custom_call.1}
  #allocation0 [shape = 'u32[]', space=smem, size = 0x4, offset = 0x4, fixed_abs, tag = 'smem constant byte address 0x4 - core index']
  #allocation1 [shape = 'u32[72,128]{1,0:T(1,128)}', space=vmem, size = 0x9000, scoped, tag = 'internal scratch']
  %s0 = inlined_call_operand.vmem [shape: bf16[8,512], index: 0, kind: input, shape index: {}]
  %s1 = inlined_call_operand.hbm [shape: f32[32,512], index: 1, kind: input, shape index: {}]
  %s2 = inlined_call_operand.vmem [shape: bf16[32,8], index: 2, kind: input, shape index: {}]
  %s3 = inlined_call_operand.vmem [shape: bf16[8,32], index: 3, kind: input, shape index: {}]
  %s4 = inlined_call_operand.vmem [shape: f32[8,1], index: 4, kind: input, shape index: {}]
  %s5 = inlined_call_operand.hbm [shape: f32[8,512], index: 5, kind: output, shape index: {}]
  %s6 = sld [smem:[#allocation0]]
  $region34: #{tpu_custom_call.1} parent=0
    _
  %s8 = ssub.s32 1, %s6
  %s9 = scalar_select 0, %s8, %s6
  $region1: #{tpu_custom_call.1} parent=0
    #allocation2 [shape = 'u8[65536]{0}', space=vmem, size = 0x10000, scoped, tag = 'input window, operand 1, single buffered']
    #allocation3 [shape = 's32[1]{0}', space=sflag, size = 0x4, scoped, tag = 'scoped memory for tpu_custom_call.1']
    #allocation4 [shape = 's32[1]{0}', space=sflag, size = 0x4, scoped, tag = 'scoped memory for tpu_custom_call.1']
    #allocation5 [shape = 'u8[16384]{0}', space=vmem, size = 0x4000, scoped, tag = 'output window, operand 0, single buffered']
    %10 = vsyncpa [#allocation3], 0
    %11 = vsyncpa [#allocation4], 0
    // Predicated region
    $region2: #{tpu_custom_call.1} parent=1 // pred_check
      _
    $region3: #{tpu_custom_call.1} parent=1 // pred_check_branch
      %13 = sbr.rel (0) target = $region5
    $region4: #{tpu_custom_call.1} parent=1 // pred_region
      _
    $region5: #{tpu_custom_call.1} parent=1 // pred_fallthru
      _
    // Predicated region
    $region6: #{tpu_custom_call.1} parent=1 // pred_check
      _
    $region7: #{tpu_custom_call.1} parent=1 // pred_check_branch
      %15 = sbr.rel (0) target = $region9
    $region8: #{tpu_custom_call.1} parent=1 // pred_region
      %17 = vsyncadd [#allocation3], 0
      %s18 = sshll.u32 %s1, 4
      %s19 = int_to_ptr.hbm [resolvable:$true] %s18
      %s20 = sshll.u32 [#allocation2], 4
      %s21 = int_to_ptr.vmem [resolvable:$true] %s20
      %26 = dma.hbm_to_vmem [thread:$0]  %s19, 2048, %s21, [#allocation3], 512, 512, 32
    $region9: #{tpu_custom_call.1} parent=1 // pred_fallthru
      _
    // Predicated region
    $region10: #{tpu_custom_call.1} parent=1 // pred_check
      _
    $region11: #{tpu_custom_call.1} parent=1 // pred_check_branch
      %28 = sbr.rel (0) target = $region13
    $region12: #{tpu_custom_call.1} parent=1 // pred_region
      _
    $region13: #{tpu_custom_call.1} parent=1 // pred_fallthru
      _
    // Predicated region
    $region14: #{tpu_custom_call.1} parent=1 // pred_check
      _
    $region15: #{tpu_custom_call.1} parent=1 // pred_check_branch
      %30 = sbr.rel (0) target = $region17
    $region16: #{tpu_custom_call.1} parent=1 // pred_region
      _
    $region17: #{tpu_custom_call.1} parent=1 // pred_fallthru
      _
    // Predicated region
    $region18: #{tpu_custom_call.1} parent=1 // pred_check
      _
    $region19: #{tpu_custom_call.1} parent=1 // pred_check_branch
      %32 = sbr.rel (0) target = $region21
    $region20: #{tpu_custom_call.1} parent=1 // pred_region
      _
    $region21: #{tpu_custom_call.1} parent=1 // pred_fallthru
      _
    // Predicated region
    $region22: #{tpu_custom_call.1} parent=1 // pred_check
      _
    $region23: #{tpu_custom_call.1} parent=1 // pred_check_branch
      %34 = sbr.rel (0) target = $region25
    $region24: #{tpu_custom_call.1} parent=1 // pred_region
      %36 = dma.done [#allocation3], 2048
    $region25: #{tpu_custom_call.1} parent=1 // pred_fallthru
      _
    %v38 = vld [vmem:[%s0] sm:$0xff]
    %v39 = vld [vmem:[%s0 + $0x8] sm:$0xff]
    %v40 = vld [vmem:[%s2] sm:$0xf]
    %v41 = vld [vmem:[%s2 + $0x4] sm:$0xf]
    %v42 = vld [vmem:[%s2 + $0x8] sm:$0xf]
    %v43 = vld [vmem:[%s2 + $0xc] sm:$0xf]
    %v44 = vld [vmem:[#allocation2] sm:$0xff]
    %v45 = vld [vmem:[#allocation2 + $0x8] sm:$0xff]
    %v46 = vld [vmem:[#allocation2 + $0x10] sm:$0xff]
    %v47 = vld [vmem:[#allocation2 + $0x18] sm:$0xff]
    %v48 = vld [vmem:[#allocation2 + $0x20] sm:$0xff]
    %v49 = vld [vmem:[#allocation2 + $0x28] sm:$0xff]
    %v50 = vld [vmem:[#allocation2 + $0x30] sm:$0xff]
    %v51 = vld [vmem:[#allocation2 + $0x38] sm:$0xff]
    %v52 = vld [vmem:[#allocation2 + $0x40] sm:$0xff]
    %v53 = vld [vmem:[#allocation2 + $0x48] sm:$0xff]
    %v54 = vld [vmem:[#allocation2 + $0x50] sm:$0xff]
    %v55 = vld [vmem:[#allocation2 + $0x58] sm:$0xff]
    %v56 = vld [vmem:[#allocation2 + $0x60] sm:$0xff]
    %v57 = vld [vmem:[#allocation2 + $0x68] sm:$0xff]
    %v58 = vld [vmem:[#allocation2 + $0x70] sm:$0xff]
    %v59 = vld [vmem:[#allocation2 + $0x78] sm:$0xff]
    %v64 = vunpack.c.l.b16 %v40
    %v65 = vunpack.c.l.b16 %v41
    %v66 = vunpack.c.l.b16 %v42
    %v67 = vunpack.c.l.b16 %v43
    %v68 = vpack.c.b16 %v65, %v64
    %v69 = vpack.c.b16 %v67, %v66
    %v72 = vunpack.c.l.b16 %v38
    %v73 = vunpack.c.h.b16 %v38
    %v74 = vunpack.c.l.b16 %v39
    %v75 = vunpack.c.h.b16 %v39
    %v76 = vpack.c.b16 %v72, %v72
    %v77 = vpack.c.b16 %v73, %v73
    %v78 = vpack.c.b16 %v74, %v74
    %v79 = vpack.c.b16 %v75, %v75
    %vm80 = vcmask 64512
    %v82 = vsel %vm80, %v68, 0
    %v85 = vsel %vm80, %v69, 0
    %vm87 = vcmask 1043456
    %v89 = vsel %vm87, %v76, 0
    %v92 = vsel %vm87, %v77, 0
    %v95 = vsel %vm87, %v78, 0
    %v98 = vsel %vm87, %v79, 0
    %100 = vmatpush.bf16.msra.mxu0 0
    %101 = vmatpush.bf16.msra.mxu0 0
    %102 = vmatpush.bf16.msra.mxu0 0
    %103 = vmatpush.bf16.msra.mxu0 0
    %104 = vmatpush.bf16.msra.mxu0 0
    %105 = vmatpush.bf16.msra.mxu0 0
    %106 = vmatpush.bf16.msra.mxu0 0
    %107 = vmatpush.bf16.msra.mxu0 %v89
    %108 = vmatmul.bf16.gmra.mxu0 %v82
    %v109 = vpop.f32.mrf.mxu0
    %v110 = vadd.f32 %v44, %v109
    %v111 = vpop.f32.mrf.mxu0
    %v112 = vadd.f32 %v48, %v111
    %113 = vmatmul.bf16.gmra.mxu0 %v85
    %v114 = vpop.f32.mrf.mxu0
    %v115 = vadd.f32 %v52, %v114
    %v116 = vpop.f32.mrf.mxu0
    %v117 = vadd.f32 %v56, %v116
    %118 = vdwg.mxu0
    %119 = vmatpush.bf16.msra.mxu0 0
    %120 = vmatpush.bf16.msra.mxu0 0
    %121 = vmatpush.bf16.msra.mxu0 0
    %122 = vmatpush.bf16.msra.mxu0 0
    %123 = vmatpush.bf16.msra.mxu0 0
    %124 = vmatpush.bf16.msra.mxu0 0
    %125 = vmatpush.bf16.msra.mxu0 0
    %126 = vmatpush.bf16.msra.mxu0 %v92
    %127 = vmatmul.bf16.gmra.mxu0 %v82
    %v128 = vpop.f32.mrf.mxu0
    %v129 = vadd.f32 %v45, %v128
    %v130 = vpop.f32.mrf.mxu0
    %v131 = vadd.f32 %v49, %v130
    %132 = vmatmul.bf16.gmra.mxu0 %v85
    %v133 = vpop.f32.mrf.mxu0
    %v134 = vadd.f32 %v53, %v133
    %v135 = vpop.f32.mrf.mxu0
    %v136 = vadd.f32 %v57, %v135
    %137 = vdwg.mxu0
    %138 = vmatpush.bf16.msra.mxu0 0
    %139 = vmatpush.bf16.msra.mxu0 0
    %140 = vmatpush.bf16.msra.mxu0 0
    %141 = vmatpush.bf16.msra.mxu0 0
    %142 = vmatpush.bf16.msra.mxu0 0
    %143 = vmatpush.bf16.msra.mxu0 0
    %144 = vmatpush.bf16.msra.mxu0 0
    %145 = vmatpush.bf16.msra.mxu0 %v95
    %146 = vmatmul.bf16.gmra.mxu0 %v82
    %v147 = vpop.f32.mrf.mxu0
    %v148 = vadd.f32 %v46, %v147
    %v149 = vpop.f32.mrf.mxu0
    %v150 = vadd.f32 %v50, %v149
    %151 = vmatmul.bf16.gmra.mxu0 %v85
    %v152 = vpop.f32.mrf.mxu0
    %v153 = vadd.f32 %v54, %v152
    %v154 = vpop.f32.mrf.mxu0
    %v155 = vadd.f32 %v58, %v154
    %156 = vdwg.mxu0
    %157 = vmatpush.bf16.msra.mxu0 0
    %158 = vmatpush.bf16.msra.mxu0 0
    %159 = vmatpush.bf16.msra.mxu0 0
    %160 = vmatpush.bf16.msra.mxu0 0
    %161 = vmatpush.bf16.msra.mxu0 0
    %162 = vmatpush.bf16.msra.mxu0 0
    %163 = vmatpush.bf16.msra.mxu0 0
    %164 = vmatpush.bf16.msra.mxu0 %v98
    %165 = vmatmul.bf16.gmra.mxu0 %v82
    %v166 = vpop.f32.mrf.mxu0
    %v167 = vadd.f32 %v47, %v166
    %v168 = vpop.f32.mrf.mxu0
    %v169 = vadd.f32 %v51, %v168
    %170 = vmatmul.bf16.gmra.mxu0 %v85
    %v171 = vpop.f32.mrf.mxu0
    %v172 = vadd.f32 %v55, %v171
    %v173 = vpop.f32.mrf.mxu0
    %v174 = vadd.f32 %v59, %v173
    %175 = vdwg.mxu0
    %v176 = vxor.u32 %v110, 2147483648
    %v177 = vxor.u32 %v129, 2147483648
    %v178 = vxor.u32 %v148, 2147483648
    %v179 = vxor.u32 %v167, 2147483648
    %v180 = vxor.u32 %v112, 2147483648
    %v181 = vxor.u32 %v131, 2147483648
    %v182 = vxor.u32 %v150, 2147483648
    %v183 = vxor.u32 %v169, 2147483648
    %v184 = vxor.u32 %v115, 2147483648
    %v185 = vxor.u32 %v134, 2147483648
    %v186 = vxor.u32 %v153, 2147483648
    %v187 = vxor.u32 %v172, 2147483648
    %v188 = vxor.u32 %v117, 2147483648
    %v189 = vxor.u32 %v136, 2147483648
    %v190 = vxor.u32 %v155, 2147483648
    %v191 = vxor.u32 %v174, 2147483648
    %v192 = vmul.f32 %v176, 1.442695
    %v193 = vpow.pop %v192
    %v194 = vmul.f32 %v177, 1.442695
    %v195 = vpow.pop %v194
    %v196 = vmul.f32 %v178, 1.442695
    %v197 = vpow.pop %v196
    %v198 = vmul.f32 %v179, 1.442695
    %v199 = vpow.pop %v198
    %v200 = vmul.f32 %v180, 1.442695
    %v201 = vpow.pop %v200
    %v202 = vmul.f32 %v181, 1.442695
    %v203 = vpow.pop %v202
    %v204 = vmul.f32 %v182, 1.442695
    %v205 = vpow.pop %v204
    %v206 = vmul.f32 %v183, 1.442695
    %v207 = vpow.pop %v206
    %v208 = vmul.f32 %v184, 1.442695
    %v209 = vpow.pop %v208
    %v210 = vmul.f32 %v185, 1.442695
    %v211 = vpow.pop %v210
    %v212 = vmul.f32 %v186, 1.442695
    %v213 = vpow.pop %v212
    %v214 = vmul.f32 %v187, 1.442695
    %v215 = vpow.pop %v214
    %v216 = vmul.f32 %v188, 1.442695
    %v217 = vpow.pop %v216
    %v218 = vmul.f32 %v189, 1.442695
    %v219 = vpow.pop %v218
    %v220 = vmul.f32 %v190, 1.442695
    %v221 = vpow.pop %v220
    %v222 = vmul.f32 %v191, 1.442695
    %v223 = vpow.pop %v222
    %v224 = vadd.f32 %v193, 1.0
    %v225 = vadd.f32 %v195, 1.0
    %v226 = vadd.f32 %v197, 1.0
    %v227 = vadd.f32 %v199, 1.0
    %v228 = vadd.f32 %v201, 1.0
    %v229 = vadd.f32 %v203, 1.0
    %v230 = vadd.f32 %v205, 1.0
    %v231 = vadd.f32 %v207, 1.0
    %v232 = vadd.f32 %v209, 1.0
    %v233 = vadd.f32 %v211, 1.0
    %v234 = vadd.f32 %v213, 1.0
    %v235 = vadd.f32 %v215, 1.0
    %v236 = vadd.f32 %v217, 1.0
    %v237 = vadd.f32 %v219, 1.0
    %v238 = vadd.f32 %v221, 1.0
    %v239 = vadd.f32 %v223, 1.0
    %v240 = vrcp.pop %v224
    %v241 = vmul.f32 %v224, %v240
    %v242 = vsub.f32 1.0, %v241
    %v243 = vmul.f32 %v240, %v242
    %v244 = vadd.f32 %v240, %v243
    %vm245 = vweird.f32 %v224
    %vm246 = vweird.f32 %v240
    %vm247 = vmor %vm245, %vm246
    %v248 = vsel %vm247, %v240, %v244
    %v249 = vand.u32 2147483647, %v224
    %vm250 = vcmp.eq.f32.partialorder %v249, 8.507059e+37
    %v251 = vand.u32 %v224, 2147483648
    %v252 = vor.u32 1.1754944e-38, %v251
    %v253 = vsel %vm250, %v252, %v248
    %v254 = vmul.f32 1.0, %v253
    %v255 = vrcp.pop %v225
    %v256 = vmul.f32 %v225, %v255
    %v257 = vsub.f32 1.0, %v256
    %v258 = vmul.f32 %v255, %v257
    %v259 = vadd.f32 %v255, %v258
    %vm260 = vweird.f32 %v225
    %vm261 = vweird.f32 %v255
    %vm262 = vmor %vm260, %vm261
    %v263 = vsel %vm262, %v255, %v259
    %v264 = vand.u32 2147483647, %v225
    %vm265 = vcmp.eq.f32.partialorder %v264, 8.507059e+37
    %v266 = vand.u32 %v225, 2147483648
    %v267 = vor.u32 1.1754944e-38, %v266
    %v268 = vsel %vm265, %v267, %v263
    %v269 = vmul.f32 1.0, %v268
    %v270 = vrcp.pop %v226
    %v271 = vmul.f32 %v226, %v270
    %v272 = vsub.f32 1.0, %v271
    %v273 = vmul.f32 %v270, %v272
    %v274 = vadd.f32 %v270, %v273
    %vm275 = vweird.f32 %v226
    %vm276 = vweird.f32 %v270
    %vm277 = vmor %vm275, %vm276
    %v278 = vsel %vm277, %v270, %v274
    %v279 = vand.u32 2147483647, %v226
    %vm280 = vcmp.eq.f32.partialorder %v279, 8.507059e+37
    %v281 = vand.u32 %v226, 2147483648
    %v282 = vor.u32 1.1754944e-38, %v281
    %v283 = vsel %vm280, %v282, %v278
    %v284 = vmul.f32 1.0, %v283
    %v285 = vrcp.pop %v227
    %v286 = vmul.f32 %v227, %v285
    %v287 = vsub.f32 1.0, %v286
    %v288 = vmul.f32 %v285, %v287
    %v289 = vadd.f32 %v285, %v288
    %vm290 = vweird.f32 %v227
    %vm291 = vweird.f32 %v285
    %vm292 = vmor %vm290, %vm291
    %v293 = vsel %vm292, %v285, %v289
    %v294 = vand.u32 2147483647, %v227
    %vm295 = vcmp.eq.f32.partialorder %v294, 8.507059e+37
    %v296 = vand.u32 %v227, 2147483648
    %v297 = vor.u32 1.1754944e-38, %v296
    %v298 = vsel %vm295, %v297, %v293
    %v299 = vmul.f32 1.0, %v298
    %v300 = vrcp.pop %v228
    %v301 = vmul.f32 %v228, %v300
    %v302 = vsub.f32 1.0, %v301
    %v303 = vmul.f32 %v300, %v302
    %v304 = vadd.f32 %v300, %v303
    %vm305 = vweird.f32 %v228
    %vm306 = vweird.f32 %v300
    %vm307 = vmor %vm305, %vm306
    %v308 = vsel %vm307, %v300, %v304
    %v309 = vand.u32 2147483647, %v228
    %vm310 = vcmp.eq.f32.partialorder %v309, 8.507059e+37
    %v311 = vand.u32 %v228, 2147483648
    %v312 = vor.u32 1.1754944e-38, %v311
    %v313 = vsel %vm310, %v312, %v308
    %v314 = vmul.f32 1.0, %v313
    %v315 = vrcp.pop %v229
    %v316 = vmul.f32 %v229, %v315
    %v317 = vsub.f32 1.0, %v316
    %v318 = vmul.f32 %v315, %v317
    %v319 = vadd.f32 %v315, %v318
    %vm320 = vweird.f32 %v229
    %vm321 = vweird.f32 %v315
    %vm322 = vmor %vm320, %vm321
    %v323 = vsel %vm322, %v315, %v319
    %v324 = vand.u32 2147483647, %v229
    %vm325 = vcmp.eq.f32.partialorder %v324, 8.507059e+37
    %v326 = vand.u32 %v229, 2147483648
    %v327 = vor.u32 1.1754944e-38, %v326
    %v328 = vsel %vm325, %v327, %v323
    %v329 = vmul.f32 1.0, %v328
    %v330 = vrcp.pop %v230
    %v331 = vmul.f32 %v230, %v330
    %v332 = vsub.f32 1.0, %v331
    %v333 = vmul.f32 %v330, %v332
    %v334 = vadd.f32 %v330, %v333
    %vm335 = vweird.f32 %v230
    %vm336 = vweird.f32 %v330
    %vm337 = vmor %vm335, %vm336
    %v338 = vsel %vm337, %v330, %v334
    %v339 = vand.u32 2147483647, %v230
    %vm340 = vcmp.eq.f32.partialorder %v339, 8.507059e+37
    %v341 = vand.u32 %v230, 2147483648
    %v342 = vor.u32 1.1754944e-38, %v341
    %v343 = vsel %vm340, %v342, %v338
    %v344 = vmul.f32 1.0, %v343
    %v345 = vrcp.pop %v231
    %v346 = vmul.f32 %v231, %v345
    %v347 = vsub.f32 1.0, %v346
    %v348 = vmul.f32 %v345, %v347
    %v349 = vadd.f32 %v345, %v348
    %vm350 = vweird.f32 %v231
    %vm351 = vweird.f32 %v345
    %vm352 = vmor %vm350, %vm351
    %v353 = vsel %vm352, %v345, %v349
    %v354 = vand.u32 2147483647, %v231
    %vm355 = vcmp.eq.f32.partialorder %v354, 8.507059e+37
    %v356 = vand.u32 %v231, 2147483648
    %v357 = vor.u32 1.1754944e-38, %v356
    %v358 = vsel %vm355, %v357, %v353
    %v359 = vmul.f32 1.0, %v358
    %v360 = vrcp.pop %v232
    %v361 = vmul.f32 %v232, %v360
    %v362 = vsub.f32 1.0, %v361
    %v363 = vmul.f32 %v360, %v362
    %v364 = vadd.f32 %v360, %v363
    %vm365 = vweird.f32 %v232
    %vm366 = vweird.f32 %v360
    %vm367 = vmor %vm365, %vm366
    %v368 = vsel %vm367, %v360, %v364
    %v369 = vand.u32 2147483647, %v232
    %vm370 = vcmp.eq.f32.partialorder %v369, 8.507059e+37
    %v371 = vand.u32 %v232, 2147483648
    %v372 = vor.u32 1.1754944e-38, %v371
    %v373 = vsel %vm370, %v372, %v368
    %v374 = vmul.f32 1.0, %v373
    %v375 = vrcp.pop %v233
    %v376 = vmul.f32 %v233, %v375
    %v377 = vsub.f32 1.0, %v376
    %v378 = vmul.f32 %v375, %v377
    %v379 = vadd.f32 %v375, %v378
    %vm380 = vweird.f32 %v233
    %vm381 = vweird.f32 %v375
    %vm382 = vmor %vm380, %vm381
    %v383 = vsel %vm382, %v375, %v379
    %v384 = vand.u32 2147483647, %v233
    %vm385 = vcmp.eq.f32.partialorder %v384, 8.507059e+37
    %v386 = vand.u32 %v233, 2147483648
    %v387 = vor.u32 1.1754944e-38, %v386
    %v388 = vsel %vm385, %v387, %v383
    %v389 = vmul.f32 1.0, %v388
    %v390 = vrcp.pop %v234
    %v391 = vmul.f32 %v234, %v390
    %v392 = vsub.f32 1.0, %v391
    %v393 = vmul.f32 %v390, %v392
    %v394 = vadd.f32 %v390, %v393
    %vm395 = vweird.f32 %v234
    %vm396 = vweird.f32 %v390
    %vm397 = vmor %vm395, %vm396
    %v398 = vsel %vm397, %v390, %v394
    %v399 = vand.u32 2147483647, %v234
    %vm400 = vcmp.eq.f32.partialorder %v399, 8.507059e+37
    %v401 = vand.u32 %v234, 2147483648
    %v402 = vor.u32 1.1754944e-38, %v401
    %v403 = vsel %vm400, %v402, %v398
    %v404 = vmul.f32 1.0, %v403
    %v405 = vrcp.pop %v235
    %v406 = vmul.f32 %v235, %v405
    %v407 = vsub.f32 1.0, %v406
    %v408 = vmul.f32 %v405, %v407
    %v409 = vadd.f32 %v405, %v408
    %vm410 = vweird.f32 %v235
    %vm411 = vweird.f32 %v405
    %vm412 = vmor %vm410, %vm411
    %v413 = vsel %vm412, %v405, %v409
    %v414 = vand.u32 2147483647, %v235
    %vm415 = vcmp.eq.f32.partialorder %v414, 8.507059e+37
    %v416 = vand.u32 %v235, 2147483648
    %v417 = vor.u32 1.1754944e-38, %v416
    %v418 = vsel %vm415, %v417, %v413
    %v419 = vmul.f32 1.0, %v418
    %v420 = vrcp.pop %v236
    %v421 = vmul.f32 %v236, %v420
    %v422 = vsub.f32 1.0, %v421
    %v423 = vmul.f32 %v420, %v422
    %v424 = vadd.f32 %v420, %v423
    %vm425 = vweird.f32 %v236
    %vm426 = vweird.f32 %v420
    %vm427 = vmor %vm425, %vm426
    %v428 = vsel %vm427, %v420, %v424
    %v429 = vand.u32 2147483647, %v236
    %vm430 = vcmp.eq.f32.partialorder %v429, 8.507059e+37
    %v431 = vand.u32 %v236, 2147483648
    %v432 = vor.u32 1.1754944e-38, %v431
    %v433 = vsel %vm430, %v432, %v428
    %v434 = vmul.f32 1.0, %v433
    %v435 = vrcp.pop %v237
    %v436 = vmul.f32 %v237, %v435
    %v437 = vsub.f32 1.0, %v436
    %v438 = vmul.f32 %v435, %v437
    %v439 = vadd.f32 %v435, %v438
    %vm440 = vweird.f32 %v237
    %vm441 = vweird.f32 %v435
    %vm442 = vmor %vm440, %vm441
    %v443 = vsel %vm442, %v435, %v439
    %v444 = vand.u32 2147483647, %v237
    %vm445 = vcmp.eq.f32.partialorder %v444, 8.507059e+37
    %v446 = vand.u32 %v237, 2147483648
    %v447 = vor.u32 1.1754944e-38, %v446
    %v448 = vsel %vm445, %v447, %v443
    %v449 = vmul.f32 1.0, %v448
    %v450 = vrcp.pop %v238
    %v451 = vmul.f32 %v238, %v450
    %v452 = vsub.f32 1.0, %v451
    %v453 = vmul.f32 %v450, %v452
    %v454 = vadd.f32 %v450, %v453
    %vm455 = vweird.f32 %v238
    %vm456 = vweird.f32 %v450
    %vm457 = vmor %vm455, %vm456
    %v458 = vsel %vm457, %v450, %v454
    %v459 = vand.u32 2147483647, %v238
    %vm460 = vcmp.eq.f32.partialorder %v459, 8.507059e+37
    %v461 = vand.u32 %v238, 2147483648
    %v462 = vor.u32 1.1754944e-38, %v461
    %v463 = vsel %vm460, %v462, %v458
    %v464 = vmul.f32 1.0, %v463
    %v465 = vrcp.pop %v239
    %v466 = vmul.f32 %v239, %v465
    %v467 = vsub.f32 1.0, %v466
    %v468 = vmul.f32 %v465, %v467
    %v469 = vadd.f32 %v465, %v468
    %vm470 = vweird.f32 %v239
    %vm471 = vweird.f32 %v465
    %vm472 = vmor %vm470, %vm471
    %v473 = vsel %vm472, %v465, %v469
    %v474 = vand.u32 2147483647, %v239
    %vm475 = vcmp.eq.f32.partialorder %v474, 8.507059e+37
    %v476 = vand.u32 %v239, 2147483648
    %v477 = vor.u32 1.1754944e-38, %v476
    %v478 = vsel %vm475, %v477, %v473
    %v479 = vmul.f32 1.0, %v478
    %v480 = vmul.f32 %v110, %v254
    %v481 = vmul.f32 %v129, %v269
    %v482 = vmul.f32 %v148, %v284
    %v483 = vmul.f32 %v167, %v299
    %v484 = vmul.f32 %v112, %v314
    %v485 = vmul.f32 %v131, %v329
    %v486 = vmul.f32 %v150, %v344
    %v487 = vmul.f32 %v169, %v359
    %v488 = vmul.f32 %v115, %v374
    %v489 = vmul.f32 %v134, %v389
    %v490 = vmul.f32 %v153, %v404
    %v491 = vmul.f32 %v172, %v419
    %v492 = vmul.f32 %v117, %v434
    %v493 = vmul.f32 %v136, %v449
    %v494 = vmul.f32 %v155, %v464
    %v495 = vmul.f32 %v174, %v479
    %v496 = vld [vmem:[%s3] sm:$0xf]
    %v497 = vpack.c.bf16 %v484, %v480
    %v498 = vpack.c.bf16 %v485, %v481
    %v499 = vpack.c.bf16 %v486, %v482
    %v500 = vpack.c.bf16 %v487, %v483
    %v501 = vpack.c.bf16 %v492, %v488
    %v502 = vpack.c.bf16 %v493, %v489
    %v503 = vpack.c.bf16 %v494, %v490
    %v504 = vpack.c.bf16 %v495, %v491
    %v505 = vld [vmem:[%s4] sm:$0xff]
    %507 = vset.pattern.permute.xlu0 0
    %508 = vperm.xlu0 %507, %v505
    %v509 = vpop.permute.xlu0 %508
    %vm511 = vcmask 261120
    %v513 = vsel %vm511, %v496, 0
    %515 = vmatpush.bf16.msra.mxu0 0
    %516 = vmatpush.bf16.msra.mxu0 0
    %517 = vmatpush.bf16.msra.mxu0 0
    %518 = vmatpush.bf16.msra.mxu0 0
    %519 = vmatpush.bf16.msra.mxu0 0
    %520 = vmatpush.bf16.msra.mxu0 0
    %521 = vmatpush.bf16.msra.mxu0 %v501
    %522 = vmatpush.bf16.msra.mxu0 %v497
    %523 = vmatmul.bf16.gmra.mxu0 %v513
    %v524 = vpop.f32.mrf.mxu0
    %v525 = vadd.f32 %v509, %v524
    %v526 = vpop.f32.mrf.mxu0
    %527 = vdwg.mxu0
    %528 = vmatpush.bf16.msra.mxu0 0
    %529 = vmatpush.bf16.msra.mxu0 0
    %530 = vmatpush.bf16.msra.mxu0 0
    %531 = vmatpush.bf16.msra.mxu0 0
    %532 = vmatpush.bf16.msra.mxu0 0
    %533 = vmatpush.bf16.msra.mxu0 0
    %534 = vmatpush.bf16.msra.mxu0 %v502
    %535 = vmatpush.bf16.msra.mxu0 %v498
    %536 = vmatmul.bf16.gmra.mxu0 %v513
    %v537 = vpop.f32.mrf.mxu0
    %v538 = vadd.f32 %v509, %v537
    %v539 = vpop.f32.mrf.mxu0
    %540 = vdwg.mxu0
    %541 = vmatpush.bf16.msra.mxu0 0
    %542 = vmatpush.bf16.msra.mxu0 0
    %543 = vmatpush.bf16.msra.mxu0 0
    %544 = vmatpush.bf16.msra.mxu0 0
    %545 = vmatpush.bf16.msra.mxu0 0
    %546 = vmatpush.bf16.msra.mxu0 0
    %547 = vmatpush.bf16.msra.mxu0 %v503
    %548 = vmatpush.bf16.msra.mxu0 %v499
    %549 = vmatmul.bf16.gmra.mxu0 %v513
    %v550 = vpop.f32.mrf.mxu0
    %v551 = vadd.f32 %v509, %v550
    %v552 = vpop.f32.mrf.mxu0
    %553 = vdwg.mxu0
    %554 = vmatpush.bf16.msra.mxu0 0
    %555 = vmatpush.bf16.msra.mxu0 0
    %556 = vmatpush.bf16.msra.mxu0 0
    %557 = vmatpush.bf16.msra.mxu0 0
    %558 = vmatpush.bf16.msra.mxu0 0
    %559 = vmatpush.bf16.msra.mxu0 0
    %560 = vmatpush.bf16.msra.mxu0 %v504
    %561 = vmatpush.bf16.msra.mxu0 %v500
    %562 = vmatmul.bf16.gmra.mxu0 %v513
    %v563 = vpop.f32.mrf.mxu0
    %v564 = vadd.f32 %v509, %v563
    %v565 = vpop.f32.mrf.mxu0
    %566 = vdwg.mxu0
    %v567 = vunpack.c.l.bf16 %v38
    %v568 = vunpack.c.h.bf16 %v38
    %v569 = vunpack.c.l.bf16 %v39
    %v570 = vunpack.c.h.bf16 %v39
    %v571 = vadd.f32 %v525, %v567
    %v572 = vadd.f32 %v538, %v568
    %v573 = vadd.f32 %v551, %v569
    %v574 = vadd.f32 %v564, %v570
    %575 = vst [vmem:[#allocation5] sm:$0xff] %v571
    %576 = vst [vmem:[#allocation5 + $0x8] sm:$0xff] %v572
    %577 = vst [vmem:[#allocation5 + $0x10] sm:$0xff] %v573
    %578 = vst [vmem:[#allocation5 + $0x18] sm:$0xff] %v574
    // Predicated region
    $region26: #{tpu_custom_call.1} parent=1 // pred_check
      _
    $region27: #{tpu_custom_call.1} parent=1 // pred_check_branch
      %580 = sbr.rel (0) target = $region29
    $region28: #{tpu_custom_call.1} parent=1 // pred_region
      %582 = vsyncadd [#allocation4], 0
      %s584 = sshll.u32 [#allocation5], 4
      %s585 = int_to_ptr.vmem [resolvable:$true] %s584
      %s586 = sshll.u32 %s5, 4
      %s587 = int_to_ptr.hbm [resolvable:$true] %s586
      %589 = dma.vmem_to_hbm [thread:$0]  %s585, 512, %s587, [#allocation4]
    $region29: #{tpu_custom_call.1} parent=1 // pred_fallthru
      _
    // Predicated region
    $region30: #{tpu_custom_call.1} parent=1 // pred_check
      _
    $region31: #{tpu_custom_call.1} parent=1 // pred_check_branch
      %591 = sbr.rel (0) target = $region33
    $region32: #{tpu_custom_call.1} parent=1 // pred_region
      %593 = dma.done [#allocation4], 512
    $region33: #{tpu_custom_call.1} parent=1 // pred_fallthru
      _
    %594 = vsyncpa [#allocation3], 1
    %595 = vsyncpa [#allocation4], 1

</llo_original>
